<compile_context>
chip_gen: v6e
topology: v6e:2x2x1
jax: 0.10.0
libtpu: 0.0.40
codegen_flags: <defaults>
</compile_context>

<pallas_src>
import jax
import jax.numpy as jnp
import numpy as np
from jax.experimental import pallas as pl
from jax.experimental.pallas import tpu as pltpu


_MXU_MIN_K = 32  # route a contraction to the MXU when the reduced dim is >= this


def _small_channel_matmul(w, x_cols):
    """(out_ch, in_ch) @ (in_ch, T) as an unrolled VPU broadcast multiply-add.

    Used only for very thin contractions (in_ch < _MXU_MIN_K) where even a
    quarter-filled MXU would not pay off.  Accumulates explicitly in float32.
    """
    wf = w.astype(jnp.float32)
    xf = x_cols.astype(jnp.float32)
    out_ch, in_ch = wf.shape
    acc = wf[:, 0:1] * xf[0:1, :]
    for c in range(1, in_ch):
        acc = acc + wf[:, c:c + 1] * xf[c:c + 1, :]
    return acc


def attention_block_kernel(x_ref, w1_ref, b1_ref, w2_ref, b2_ref, o_ref):
    # x_ref / o_ref: (C, T) tile -- channels on sublanes, voxels on lanes (lane-dense).
    x = x_ref[...]
    xf = x.astype(jnp.float32)          # single in-register cast

    w1 = w1_ref[...]                    # (Ch, C)   BN1 scale already folded in
    b1 = b1_ref[...]                    # (Ch, 1)   conv1 bias + BN1 shift
    w2 = w2_ref[...]                    # (C, Ch)   BN2 scale already folded in
    b2 = b2_ref[...]                    # (C, 1)    conv2 bias + BN2 shift

    C = xf.shape[0]
    Ch = w1.shape[0]

    # conv1 (1x1x1) + folded BN1 + ReLU  -> (Ch, T)
    if C >= _MXU_MIN_K:
        h = jnp.dot(w1.astype(jnp.bfloat16), xf.astype(jnp.bfloat16),
                    preferred_element_type=jnp.float32)
    else:
        h = _small_channel_matmul(w1, xf)
    h = jnp.maximum(h + b1, 0.0)

    # conv2 (1x1x1) + folded BN2 + Sigmoid -> (C, T)
    if Ch >= _MXU_MIN_K:
        y = jnp.dot(w2.astype(jnp.bfloat16), h.astype(jnp.bfloat16),
                    preferred_element_type=jnp.float32)
    else:
        y = _small_channel_matmul(w2, h)
    # (exp lives on the EUP; the divide is cheap relative to DMA here, so keep the
    #  exact sigmoid rather than pl.reciprocal(approx=True).)
    gate = jax.nn.sigmoid(y + b2)

    # gate * residual
    o_ref[...] = (gate * xf).astype(o_ref.dtype)


def _vmem_footprint_bytes(C, Ch, T, itemsize):
    tile = C * T * itemsize
    in_out = 2 * tile + 2 * tile                 # double-buffered x tile + out tile
    f32_tmp = (2 * C + Ch) * T * 4               # xf, gate/y (C rows) + h (Ch rows)
    weights = (2 * Ch * C + Ch + C) * 4
    return in_out + f32_tmp + weights


def _choose_lane_tile(C, Ch, L, N, itemsize, target_tile_bytes, vmem_cap_bytes):
    """Pick the lane-tile width T (multiple of 128, or == L)."""
    bytes_per_lane = C * itemsize
    if bytes_per_lane * L <= target_tile_bytes:
        T = L                                    # whole voxel axis in one block
    else:
        T = max(128, (target_tile_bytes // bytes_per_lane) // 128 * 128)
        # Keep >= ~8 grid steps so both v7x TensorCores stay busy.
        while T > 512 and N * (-(-L // T)) < 8:
            T = max(512, (T // 2) // 128 * 128)
    # Shrink until the footprint (with 20% headroom) fits the VMEM cap.
    while T > 128 and _vmem_footprint_bytes(C, Ch, T, itemsize) * 1.2 > vmem_cap_bytes:
        T = max(128, (T // 2) // 128 * 128)
    return T


def attention_block_3d(x_ncdhw, params, *,
                       target_tile_bytes=2 * 1024 * 1024,
                       vmem_cap_bytes=48 * 1024 * 1024):
    """AttentionBlock3D forward (BatchNorm in eval mode, folded into conv weights).

    x_ncdhw: (N, C, D, H, W).  Only reshapes (no data-moving transposes, no padding,
    no post-kernel slicing) around the pallas_call.
    """
    N, C, D, H, W = x_ncdhw.shape
    Ch = C // 2
    L = D * H * W

    x3 = x_ncdhw.reshape(N, C, L)
    itemsize = jnp.dtype(x3.dtype).itemsize

    T = _choose_lane_tile(C, Ch, L, N, itemsize, target_tile_bytes, vmem_cap_bytes)
    grid = (N, pl.cdiv(L, T))

    w1 = params["w1f"]           # (Ch, C)
    b1 = params["b1f"]           # (Ch, 1)
    w2 = params["w2f"]           # (C, Ch)
    b2 = params["b2f"]           # (C, 1)

    vmem_bytes = int(min(max(_vmem_footprint_bytes(C, Ch, T, itemsize) * 1.2,
                             4 * 1024 * 1024),
                         vmem_cap_bytes))

    out_flat = pl.pallas_call(
        attention_block_kernel,
        out_shape=jax.ShapeDtypeStruct((N, C, L), x3.dtype),
        grid_spec=pltpu.PrefetchScalarGridSpec(
            num_scalar_prefetch=0,
            grid=grid,
            in_specs=[
                # x tile: (C, T) after squeezing the batch dim.  The ragged last block
                # (when L % T != 0) reads don't-care lanes; safe because the contraction
                # is over C only and OOB output writes are discarded.
                pl.BlockSpec((None, C, T), lambda n, t: (n, 0, t)),
                pl.BlockSpec((Ch, C), lambda n, t: (0, 0)),    # w1 (full, resident)
                pl.BlockSpec((Ch, 1), lambda n, t: (0, 0)),    # b1
                pl.BlockSpec((C, Ch), lambda n, t: (0, 0)),    # w2 (full, resident)
                pl.BlockSpec((C, 1), lambda n, t: (0, 0)),     # b2
            ],
            out_specs=pl.BlockSpec((None, C, T), lambda n, t: (n, 0, t)),
        ),
        compiler_params=pltpu.CompilerParams(
            dimension_semantics=("parallel", "parallel"),
            vmem_limit_bytes=vmem_bytes,
        ),
    )(x3, w1, b1, w2, b2)

    return out_flat.reshape(N, C, D, H, W)


def make_params(key, in_channels, eps=1e-5):
    """Deterministic synthetic parameters with BatchNorm3d (eval mode) folded.

    scale = gamma / sqrt(var + eps) is folded directly into the conv weights
    (per output channel); only the shift beta + (conv_bias - mean) * scale
    remains as an in-kernel add.
    """
    C = in_channels
    Ch = C // 2
    ks = jax.random.split(key, 10)

    conv1_w = jax.random.normal(ks[0], (Ch, C), jnp.float32) * 0.1   # PyTorch (Ch, C, 1,1,1)
    conv1_b = jax.random.normal(ks[1], (Ch,), jnp.float32) * 0.1
    gamma1 = 1.0 + 0.1 * jax.random.normal(ks[2], (Ch,), jnp.float32)
    beta1 = 0.1 * jax.random.normal(ks[3], (Ch,), jnp.float32)
    mean1 = 0.1 * jax.random.normal(ks[4], (Ch,), jnp.float32)
    var1 = jnp.abs(1.0 + 0.1 * jax.random.normal(ks[5], (Ch,), jnp.float32))

    conv2_w = jax.random.normal(ks[6], (C, Ch), jnp.float32) * 0.1   # PyTorch (C, Ch, 1,1,1)
    conv2_b = jax.random.normal(ks[7], (C,), jnp.float32) * 0.1
    gamma2 = 1.0 + 0.1 * jax.random.normal(ks[8], (C,), jnp.float32)
    beta2 = 0.1 * jax.random.normal(ks[9], (C,), jnp.float32)
    mean2 = 0.05 * jnp.ones((C,), jnp.float32)
    var2 = jnp.ones((C,), jnp.float32)

    s1 = gamma1 / jnp.sqrt(var1 + eps)
    s2 = gamma2 / jnp.sqrt(var2 + eps)

    w1f = conv1_w * s1[:, None]                  # (Ch, C)
    b1f = beta1 + (conv1_b - mean1) * s1         # (Ch,)
    w2f = conv2_w * s2[:, None]                  # (C, Ch)
    b2f = beta2 + (conv2_b - mean2) * s2         # (C,)

    return {
        "w1f": w1f,
        "b1f": b1f.reshape(Ch, 1),
        "w2f": w2f,
        "b2f": b2f.reshape(C, 1),
    }


def reference_forward(x_ncdhw, params):
    """Pure-JAX reference matching the PyTorch forward (BN eval mode, folded)."""
    N, C, D, H, W = x_ncdhw.shape
    xf = jnp.transpose(x_ncdhw, (0, 2, 3, 4, 1)).reshape(-1, C)          # (rows, C)
    h = jnp.maximum(xf @ params["w1f"].T + params["b1f"].T, 0.0)          # (rows, Ch)
    g = jax.nn.sigmoid(h @ params["w2f"].T + params["b2f"].T)             # (rows, C)
    out = g * xf
    return out.reshape(N, D, H, W, C).transpose(0, 4, 1, 2, 3)


if __name__ == "__main__":
    key = jax.random.PRNGKey(0)
    k_x, k_p = jax.random.split(key)

    # Small demo shapes: batch=2, channels=4, depth=4, spatial=8x8 -> per-batch voxels L=256.
    N, C, D, H, W = 2, 4, 4, 8, 8
    x = jax.random.normal(k_x, (N, C, D, H, W), jnp.float32)
    params = make_params(k_p, C)

    out = jax.block_until_ready(attention_block_3d(x, params))
    ref = jax.block_until_ready(reference_forward(x, params))
    np.testing.assert_allclose(np.asarray(out), np.asarray(ref), atol=1e-5, rtol=1e-5)

    print("KERNEL_OK")
</pallas_src>

<mosaic_0001>
module attributes {stable_mosaic.version = 11 : i64} {
  func.func @attention_block_kernel(%arg0: i32, %arg1: i32, %arg2: memref<1x4x256xf32, #tpu.memory_space<vmem>>, %arg3: memref<2x4xf32, #tpu.memory_space<vmem>>, %arg4: memref<2x1xf32, #tpu.memory_space<vmem>>, %arg5: memref<4x2xf32, #tpu.memory_space<vmem>>, %arg6: memref<4x1xf32, #tpu.memory_space<vmem>>, %arg7: memref<1x4x256xf32, #tpu.memory_space<vmem>>) attributes {dimension_semantics = [#tpu.dimension_semantics<parallel>, #tpu.dimension_semantics<parallel>], iteration_bounds = array<i64: 2, 1>, scalar_prefetch = 0 : i64, scratch_operands = 0 : i64, tpu.core_type = #tpu.core_type<tc>, window_params = [{transform_indices = @transform_0, window_bounds = array<i64: 1, 4, 256>}, {pipeline_mode = #tpu.pipeline_mode<synchronous>, transform_indices = @transform_1, window_bounds = array<i64: 2, 4>}, {pipeline_mode = #tpu.pipeline_mode<synchronous>, transform_indices = @transform_2, window_bounds = array<i64: 2, 1>}, {pipeline_mode = #tpu.pipeline_mode<synchronous>, transform_indices = @transform_3, window_bounds = array<i64: 4, 2>}, {pipeline_mode = #tpu.pipeline_mode<synchronous>, transform_indices = @transform_4, window_bounds = array<i64: 4, 1>}, {transform_indices = @transform_5, window_bounds = array<i64: 1, 4, 256>}]} {
    %c0 = arith.constant 0 : index
    %c0_0 = arith.constant 0 : index
    %c0_1 = arith.constant 0 : index
    %0 = vector.load %arg2[%c0, %c0_0, %c0_1] : memref<1x4x256xf32, #tpu.memory_space<vmem>>, vector<1x4x256xf32>
    %1 = vector.shape_cast %0 : vector<1x4x256xf32> to vector<4x256xf32>
    %c0_2 = arith.constant 0 : index
    %c0_3 = arith.constant 0 : index
    %2 = vector.load %arg3[%c0_2, %c0_3] : memref<2x4xf32, #tpu.memory_space<vmem>>, vector<2x4xf32>
    %c0_4 = arith.constant 0 : index
    %c0_5 = arith.constant 0 : index
    %3 = vector.load %arg4[%c0_4, %c0_5] : memref<2x1xf32, #tpu.memory_space<vmem>>, vector<2x1xf32>
    %c0_6 = arith.constant 0 : index
    %c0_7 = arith.constant 0 : index
    %4 = vector.load %arg5[%c0_6, %c0_7] : memref<4x2xf32, #tpu.memory_space<vmem>>, vector<4x2xf32>
    %c0_8 = arith.constant 0 : index
    %c0_9 = arith.constant 0 : index
    %5 = vector.load %arg6[%c0_8, %c0_9] : memref<4x1xf32, #tpu.memory_space<vmem>>, vector<4x1xf32>
    %6 = vector.extract_strided_slice %2 {offsets = [0, 0], sizes = [2, 1], strides = [1, 1]} : vector<2x4xf32> to vector<2x1xf32>
    %7 = vector.extract_strided_slice %1 {offsets = [0, 0], sizes = [1, 256], strides = [1, 1]} : vector<4x256xf32> to vector<1x256xf32>
    %8 = vector.broadcast %6 : vector<2x1xf32> to vector<2x256xf32>
    %9 = vector.broadcast %7 : vector<1x256xf32> to vector<2x256xf32>
    %10 = arith.mulf %8, %9 : vector<2x256xf32>
    %11 = vector.extract_strided_slice %2 {offsets = [0, 1], sizes = [2, 1], strides = [1, 1]} : vector<2x4xf32> to vector<2x1xf32>
    %12 = vector.extract_strided_slice %1 {offsets = [1, 0], sizes = [1, 256], strides = [1, 1]} : vector<4x256xf32> to vector<1x256xf32>
    %13 = vector.broadcast %11 : vector<2x1xf32> to vector<2x256xf32>
    %14 = vector.broadcast %12 : vector<1x256xf32> to vector<2x256xf32>
    %15 = arith.mulf %13, %14 : vector<2x256xf32>
    %16 = arith.addf %10, %15 : vector<2x256xf32>
    %17 = vector.extract_strided_slice %2 {offsets = [0, 2], sizes = [2, 1], strides = [1, 1]} : vector<2x4xf32> to vector<2x1xf32>
    %18 = vector.extract_strided_slice %1 {offsets = [2, 0], sizes = [1, 256], strides = [1, 1]} : vector<4x256xf32> to vector<1x256xf32>
    %19 = vector.broadcast %17 : vector<2x1xf32> to vector<2x256xf32>
    %20 = vector.broadcast %18 : vector<1x256xf32> to vector<2x256xf32>
    %21 = arith.mulf %19, %20 : vector<2x256xf32>
    %22 = arith.addf %16, %21 : vector<2x256xf32>
    %23 = vector.extract_strided_slice %2 {offsets = [0, 3], sizes = [2, 1], strides = [1, 1]} : vector<2x4xf32> to vector<2x1xf32>
    %24 = vector.extract_strided_slice %1 {offsets = [3, 0], sizes = [1, 256], strides = [1, 1]} : vector<4x256xf32> to vector<1x256xf32>
    %25 = vector.broadcast %23 : vector<2x1xf32> to vector<2x256xf32>
    %26 = vector.broadcast %24 : vector<1x256xf32> to vector<2x256xf32>
    %27 = arith.mulf %25, %26 : vector<2x256xf32>
    %28 = arith.addf %22, %27 : vector<2x256xf32>
    %29 = vector.broadcast %3 : vector<2x1xf32> to vector<2x256xf32>
    %30 = arith.addf %28, %29 : vector<2x256xf32>
    %cst = arith.constant 0.000000e+00 : f32
    %31 = vector.broadcast %cst : f32 to vector<2x256xf32>
    %32 = arith.maximumf %30, %31 : vector<2x256xf32>
    %33 = vector.extract_strided_slice %4 {offsets = [0, 0], sizes = [4, 1], strides = [1, 1]} : vector<4x2xf32> to vector<4x1xf32>
    %34 = vector.extract_strided_slice %32 {offsets = [0, 0], sizes = [1, 256], strides = [1, 1]} : vector<2x256xf32> to vector<1x256xf32>
    %35 = vector.broadcast %33 : vector<4x1xf32> to vector<4x256xf32>
    %36 = vector.broadcast %34 : vector<1x256xf32> to vector<4x256xf32>
    %37 = arith.mulf %35, %36 : vector<4x256xf32>
    %38 = vector.extract_strided_slice %4 {offsets = [0, 1], sizes = [4, 1], strides = [1, 1]} : vector<4x2xf32> to vector<4x1xf32>
    %39 = vector.extract_strided_slice %32 {offsets = [1, 0], sizes = [1, 256], strides = [1, 1]} : vector<2x256xf32> to vector<1x256xf32>
    %40 = vector.broadcast %38 : vector<4x1xf32> to vector<4x256xf32>
    %41 = vector.broadcast %39 : vector<1x256xf32> to vector<4x256xf32>
    %42 = arith.mulf %40, %41 : vector<4x256xf32>
    %43 = arith.addf %37, %42 : vector<4x256xf32>
    %44 = vector.broadcast %5 : vector<4x1xf32> to vector<4x256xf32>
    %45 = arith.addf %43, %44 : vector<4x256xf32>
    %46 = arith.negf %45 : vector<4x256xf32>
    %47 = math.exp %46 : vector<4x256xf32>
    %cst_10 = arith.constant 1.000000e+00 : f32
    %48 = vector.broadcast %cst_10 : f32 to vector<4x256xf32>
    %49 = arith.addf %48, %47 : vector<4x256xf32>
    %50 = arith.divf %48, %49 : vector<4x256xf32>
    %51 = arith.mulf %50, %1 : vector<4x256xf32>
    %c0_11 = arith.constant 0 : index
    %c0_12 = arith.constant 0 : index
    %c0_13 = arith.constant 0 : index
    %52 = vector.load %arg7[%c0_11, %c0_12, %c0_13] : memref<1x4x256xf32, #tpu.memory_space<vmem>>, vector<1x4x256xf32>
    %53 = vector.shape_cast %52 : vector<1x4x256xf32> to vector<4x256xf32>
    %54 = vector.shape_cast %51 : vector<4x256xf32> to vector<1x4x256xf32>
    tpu.vector_store %arg7[%c0_11, %c0_12, %c0_13], %54 {strides = array<i32>} : memref<1x4x256xf32, #tpu.memory_space<vmem>>, vector<1x4x256xf32>,
    return
  }
  func.func @transform_0(%arg0: i32, %arg1: i32) -> (i32, i32, i32) {
    %c0_i32 = arith.constant 0 : i32
    %c0_i32_0 = arith.constant 0 : i32
    return %arg0, %c0_i32, %arg1 : i32, i32, i32
  }
  func.func @transform_1(%arg0: i32, %arg1: i32) -> (i32, i32) {
    %c0_i32 = arith.constant 0 : i32
    %c0_i32_0 = arith.constant 0 : i32
    %c0_i32_1 = arith.constant 0 : i32
    return %c0_i32, %c0_i32_0 : i32, i32
  }
  func.func @transform_2(%arg0: i32, %arg1: i32) -> (i32, i32) {
    %c0_i32 = arith.constant 0 : i32
    %c0_i32_0 = arith.constant 0 : i32
    %c0_i32_1 = arith.constant 0 : i32
    return %c0_i32, %c0_i32_0 : i32, i32
  }
  func.func @transform_3(%arg0: i32, %arg1: i32) -> (i32, i32) {
    %c0_i32 = arith.constant 0 : i32
    %c0_i32_0 = arith.constant 0 : i32
    %c0_i32_1 = arith.constant 0 : i32
    return %c0_i32, %c0_i32_0 : i32, i32
  }
  func.func @transform_4(%arg0: i32, %arg1: i32) -> (i32, i32) {
    %c0_i32 = arith.constant 0 : i32
    %c0_i32_0 = arith.constant 0 : i32
    %c0_i32_1 = arith.constant 0 : i32
    return %c0_i32, %c0_i32_0 : i32, i32
  }
  func.func @transform_5(%arg0: i32, %arg1: i32) -> (i32, i32, i32) {
    %c0_i32 = arith.constant 0 : i32
    %c0_i32_0 = arith.constant 0 : i32
    return %arg0, %c0_i32, %arg1 : i32, i32, i32
  }
}

</mosaic_0001>

<llo_original>
// kernel: tpu_custom_call.1
$region0: #{tpu_custom_call.1}
  #allocation0 [shape = 'u32[]', space=smem, size = 0x4, offset = 0x4, fixed_abs, tag = 'smem constant byte address 0x4 - core index']
  #allocation1 [shape = 'u32[144,128]{1,0:T(1,128)}', space=vmem, size = 0x12000, scoped, tag = 'internal scratch']
  %s0 = inlined_call_operand.hbm [shape: f32[2,4,256], index: 0, kind: input, shape index: {}]
  %s1 = inlined_call_operand.vmem [shape: f32[2,4], index: 1, kind: input, shape index: {}]
  %s2 = inlined_call_operand.vmem [shape: f32[2,1], index: 2, kind: input, shape index: {}]
  %s3 = inlined_call_operand.vmem [shape: f32[4,2], index: 3, kind: input, shape index: {}]
  %s4 = inlined_call_operand.vmem [shape: f32[4,1], index: 4, kind: input, shape index: {}]
  %s5 = inlined_call_operand.hbm [shape: f32[2,4,256], index: 5, kind: output, shape index: {}]
  %s6 = sld [smem:[#allocation0]]
  $region57: #{tpu_custom_call.1} parent=0
    _
  %s8 = ssub.s32 1, %s6
  %s9 = scalar_select 0, %s8, %s6
  $region1: #{tpu_custom_call.1} parent=0
    #allocation2 [shape = 'u8[8192]{0}', space=vmem, size = 0x2000, scoped, tag = 'input window, operand 0']
    #allocation3 [shape = 's32[2]{0}', space=sflag, size = 0x8, scoped, tag = 'scoped memory for tpu_custom_call.1']
    #allocation4 [shape = 's32[2]{0}', space=sflag, size = 0x8, scoped, tag = 'scoped memory for tpu_custom_call.1']
    #allocation5 [shape = 'u8[8192]{0}', space=vmem, size = 0x2000, scoped, tag = 'output window, operand 0']
    %10 = vsyncpa [#allocation3], 0
    %s11 = scalar_lea.sflag [#allocation3], 1
    %12 = vsyncpa %s11, 0
    %13 = vsyncpa [#allocation4], 0
    %s14 = scalar_lea.sflag [#allocation4], 1
    %15 = vsyncpa %s14, 0
    loop: start=0, step=1, limit=4
    $region2: #{tpu_custom_call.1} parent=1 // loop_pre_header
      _
    $region3: #{tpu_custom_call.1} parent=1 // loop_header
      %s17 = sphi 0, %s21
      %p18 = scmp.ge.s32.totalorder %s17, 4
      %s24 = sphi 0, %s36
      %s25 = sphi 0, %s32
      %s26 = sphi 0, %s24
      %s27 = sphi 0, %s25
      %s28 = sphi 0, %s26
      %s29 = sphi 0, %s27
      %s41 = sphi 0, %s43
      %s44 = sphi 0, %s41
      %s45 = sphi 0, %s44
      %s61 = sphi 0, %s45
      %s65 = sphi 0, %s65
      %s67 = sphi 0, %s65
      %s68 = sphi 0, %s67
      %s82 = sphi 0, %s68
      %s86 = sphi 0, %s86
      %s88 = sphi 0, %s86
      %s89 = sphi 0, %s88
      %s103 = sphi 0, %s89
      %s107 = sphi 0, %s107
      %s109 = sphi 0, %s107
      %s110 = sphi 0, %s109
      %s124 = sphi 0, %s110
      %s128 = sphi 0, %s128
      %s130 = sphi 0, %s128
      %s131 = sphi 0, %s130
      %s145 = sphi 0, %s131
      %s153 = sphi 0, %s155
      %s156 = sphi 0, %s153
      %s157 = sphi 0, %s156
      %s173 = sphi 0, %s157
    $region4: #{tpu_custom_call.1} parent=1 // loop_header_branch
      %20 = sbr.rel (%p18) target = $region8
    $region5: #{tpu_custom_call.1} parent=1 // loop_body
      %s22 = ssub.s32 %s17, 1
      %s23 = ssub.s32 %s17, 2
      %s30 = sadd.s32 1, %s25
      %p31 = scmp.ge.s32.totalorder %s30, 1
      %s32 = scalar_select %p31, 0, %s30
      %s33 = sadd.s32 1, %s24
      %s34 = scalar_select %p31, %s33, %s24
      %p35 = scmp.ge.s32.totalorder %s34, 2
      %s36 = scalar_select %p35, 0, %s34
      %s37 = ssub.s32 %s24, %s36
      %s38 = ssub.s32 %s25, %s32
      %s39 = sor.u32 %s37, %s38
      %p40 = scmp.eq.s32.totalorder %s39, 0
      %s42 = sadd.s32 %s41, 1
      %s43 = scalar_select %p40, %s41, %s42
      %p46 = pneg %p40
      %p47 = scmp.eq.s32.totalorder %s17, 1
      %p48 = por %p46, %p47
      %p49 = scmp.ne.s32.totalorder %s41, %s44
      %p50 = scmp.eq.s32.totalorder %s17, 0
      %p51 = por %p49, %p50
      %p52 = scmp.ne.s32.totalorder %s41, %s44
      %p53 = scmp.eq.s32.totalorder %s22, 1
      %p54 = por %p52, %p53
      %p55 = scmp.ne.s32.totalorder %s44, %s45
      %p56 = scmp.eq.s32.totalorder %s22, 0
      %p57 = por %p55, %p56
      %p58 = scmp.ne.s32.totalorder %s44, %s45
      %p59 = scmp.eq.s32.totalorder %s23, 1
      %p60 = por %p58, %p59
      %p62 = scmp.ne.s32.totalorder %s45, %s61
      %p63 = scmp.eq.s32.totalorder %s23, 0
      %p64 = por %p62, %p63
      %s66 = sadd.s32 %s65, 1
      %p69 = scmp.eq.s32.totalorder %s17, 1
      %p70 = scmp.ne.s32.totalorder %s65, %s67
      %p71 = scmp.eq.s32.totalorder %s17, 0
      %p72 = por %p70, %p71
      %p73 = scmp.ne.s32.totalorder %s65, %s67
      %p74 = scmp.eq.s32.totalorder %s22, 1
      %p75 = por %p73, %p74
      %p76 = scmp.ne.s32.totalorder %s67, %s68
      %p77 = scmp.eq.s32.totalorder %s22, 0
      %p78 = por %p76, %p77
      %p79 = scmp.ne.s32.totalorder %s67, %s68
      %p80 = scmp.eq.s32.totalorder %s23, 1
      %p81 = por %p79, %p80
      %p83 = scmp.ne.s32.totalorder %s68, %s82
      %p84 = scmp.eq.s32.totalorder %s23, 0
      %p85 = por %p83, %p84
      %s87 = sadd.s32 %s86, 1
      %p90 = scmp.eq.s32.totalorder %s17, 1
      %p91 = scmp.ne.s32.totalorder %s86, %s88
      %p92 = scmp.eq.s32.totalorder %s17, 0
      %p93 = por %p91, %p92
      %p94 = scmp.ne.s32.totalorder %s86, %s88
      %p95 = scmp.eq.s32.totalorder %s22, 1
      %p96 = por %p94, %p95
      %p97 = scmp.ne.s32.totalorder %s88, %s89
      %p98 = scmp.eq.s32.totalorder %s22, 0
      %p99 = por %p97, %p98
      %p100 = scmp.ne.s32.totalorder %s88, %s89
      %p101 = scmp.eq.s32.totalorder %s23, 1
      %p102 = por %p100, %p101
      %p104 = scmp.ne.s32.totalorder %s89, %s103
      %p105 = scmp.eq.s32.totalorder %s23, 0
      %p106 = por %p104, %p105
      %s108 = sadd.s32 %s107, 1
      %p111 = scmp.eq.s32.totalorder %s17, 1
      %p112 = scmp.ne.s32.totalorder %s107, %s109
      %p113 = scmp.eq.s32.totalorder %s17, 0
      %p114 = por %p112, %p113
      %p115 = scmp.ne.s32.totalorder %s107, %s109
      %p116 = scmp.eq.s32.totalorder %s22, 1
      %p117 = por %p115, %p116
      %p118 = scmp.ne.s32.totalorder %s109, %s110
      %p119 = scmp.eq.s32.totalorder %s22, 0
      %p120 = por %p118, %p119
      %p121 = scmp.ne.s32.totalorder %s109, %s110
      %p122 = scmp.eq.s32.totalorder %s23, 1
      %p123 = por %p121, %p122
      %p125 = scmp.ne.s32.totalorder %s110, %s124
      %p126 = scmp.eq.s32.totalorder %s23, 0
      %p127 = por %p125, %p126
      %s129 = sadd.s32 %s128, 1
      %p132 = scmp.eq.s32.totalorder %s17, 1
      %p133 = scmp.ne.s32.totalorder %s128, %s130
      %p134 = scmp.eq.s32.totalorder %s17, 0
      %p135 = por %p133, %p134
      %p136 = scmp.ne.s32.totalorder %s128, %s130
      %p137 = scmp.eq.s32.totalorder %s22, 1
      %p138 = por %p136, %p137
      %p139 = scmp.ne.s32.totalorder %s130, %s131
      %p140 = scmp.eq.s32.totalorder %s22, 0
      %p141 = por %p139, %p140
      %p142 = scmp.ne.s32.totalorder %s130, %s131
      %p143 = scmp.eq.s32.totalorder %s23, 1
      %p144 = por %p142, %p143
      %p146 = scmp.ne.s32.totalorder %s131, %s145
      %p147 = scmp.eq.s32.totalorder %s23, 0
      %p148 = por %p146, %p147
      %s149 = ssub.s32 %s24, %s36
      %s150 = ssub.s32 %s25, %s32
      %s151 = sor.u32 %s149, %s150
      %p152 = scmp.eq.s32.totalorder %s151, 0
      %s154 = sadd.s32 %s153, 1
      %s155 = scalar_select %p152, %s153, %s154
      %p158 = pneg %p152
      %p159 = scmp.eq.s32.totalorder %s17, 1
      %p160 = por %p158, %p159
      %p161 = scmp.ne.s32.totalorder %s153, %s156
      %p162 = scmp.eq.s32.totalorder %s17, 0
      %p163 = por %p161, %p162
      %p164 = scmp.ne.s32.totalorder %s153, %s156
      %p165 = scmp.eq.s32.totalorder %s22, 1
      %p166 = por %p164, %p165
      %p167 = scmp.ne.s32.totalorder %s156, %s157
      %p168 = scmp.eq.s32.totalorder %s22, 0
      %p169 = por %p167, %p168
      %p170 = scmp.ne.s32.totalorder %s156, %s157
      %p171 = scmp.eq.s32.totalorder %s23, 1
      %p172 = por %p170, %p171
      %p174 = scmp.ne.s32.totalorder %s157, %s173
      %p175 = scmp.eq.s32.totalorder %s23, 0
      %p176 = por %p174, %p175
      %p177 = scmp.le.s32.totalorder 1, %s17
      %p178 = scmp.lt.s32.totalorder %s17, 3
      %p179 = pnand %p177, %p178
      %p180 = pneg %p179
      // Predicated region
      $region9: #{tpu_custom_call.1} parent=5 // pred_check
        _
      $region10: #{tpu_custom_call.1} parent=5 // pred_check_branch
        %182 = sbr.rel (%p179) target = $region12
      $region11: #{tpu_custom_call.1} parent=5 // pred_region
        %s183 = ssub.s32 %s17, 1
        // Predicated region
        $region13: #{tpu_custom_call.1} parent=11 // pred_check
          %p184 = pneg %p78
        $region14: #{tpu_custom_call.1} parent=11 // pred_check_branch
          %186 = sbr.rel (%p184) target = $region16
        $region15: #{tpu_custom_call.1} parent=11 // pred_region
          _
        $region16: #{tpu_custom_call.1} parent=11 // pred_fallthru
          _
        // Predicated region
        $region17: #{tpu_custom_call.1} parent=11 // pred_check
          %p187 = pneg %p99
        $region18: #{tpu_custom_call.1} parent=11 // pred_check_branch
          %189 = sbr.rel (%p187) target = $region20
        $region19: #{tpu_custom_call.1} parent=11 // pred_region
          _
        $region20: #{tpu_custom_call.1} parent=11 // pred_fallthru
          _
        // Predicated region
        $region21: #{tpu_custom_call.1} parent=11 // pred_check
          %p190 = pneg %p120
        $region22: #{tpu_custom_call.1} parent=11 // pred_check_branch
          %192 = sbr.rel (%p190) target = $region24
        $region23: #{tpu_custom_call.1} parent=11 // pred_region
          _
        $region24: #{tpu_custom_call.1} parent=11 // pred_fallthru
          _
        // Predicated region
        $region25: #{tpu_custom_call.1} parent=11 // pred_check
          %p193 = pneg %p141
        $region26: #{tpu_custom_call.1} parent=11 // pred_check_branch
          %195 = sbr.rel (%p193) target = $region28
        $region27: #{tpu_custom_call.1} parent=11 // pred_region
          _
        $region28: #{tpu_custom_call.1} parent=11 // pred_fallthru
          _
      $region12: #{tpu_custom_call.1} parent=5 // pred_fallthru
        _
      %p196 = scmp.lt.s32.totalorder %s17, 2
      // Predicated region
      $region29: #{tpu_custom_call.1} parent=5 // pred_check
        %p197 = pneg %p196
      $region30: #{tpu_custom_call.1} parent=5 // pred_check_branch
        %199 = sbr.rel (%p197) target = $region32
      $region31: #{tpu_custom_call.1} parent=5 // pred_region
        // Predicated region
        $region33: #{tpu_custom_call.1} parent=31 // pred_check
          %p200 = pneg %p51
        $region34: #{tpu_custom_call.1} parent=31 // pred_check_branch
          %202 = sbr.rel (%p200) target = $region36
        $region35: #{tpu_custom_call.1} parent=31 // pred_region
          %s203 = sand.u32 %s41, 1
          %s204 = scalar_lea.sflag [#allocation3], %s203
          %s205 = sand.u32 %s41, 1
          %s206 = smul.addr %s205, 8
          %s207 = scalar_lea.vmem [#allocation2], %s206
          %s208 = smul.u32 2, %s25
          %s210 = ssub.s32 128, 128
          %211 = vsyncadd %s204, %s210
          %s212 = smul.addr %s24, 2
          %s213 = sadd.s32 %s208, %s212
          %s214 = smul.addr %s213, 64
          %s215 = scalar_lea.hbm %s0, %s214
          %s217 = sshll.u32 %s207, 4
          %s218 = int_to_ptr.vmem [resolvable:$true] %s217
          %220 = dma.hbm_to_vmem [thread:$0]  %s215, 128, %s218, %s204
        $region36: #{tpu_custom_call.1} parent=31 // pred_fallthru
          _
      $region32: #{tpu_custom_call.1} parent=5 // pred_fallthru
        _
      %p221 = scmp.le.s32.totalorder 1, %s17
      %p222 = scmp.lt.s32.totalorder %s17, 3
      %p223 = pnand %p221, %p222
      %p224 = pneg %p223
      // Predicated region
      $region37: #{tpu_custom_call.1} parent=5 // pred_check
        _
      $region38: #{tpu_custom_call.1} parent=5 // pred_check_branch
        %226 = sbr.rel (%p223) target = $region40
      $region39: #{tpu_custom_call.1} parent=5 // pred_region
        %s227 = ssub.s32 %s17, 1
        %s228 = sand.u32 %s44, 1
        %s229 = scalar_lea.sflag [#allocation3], %s228
        %s230 = sand.u32 %s44, 1
        %s231 = smul.addr %s230, 8
        %s232 = scalar_lea.vmem [#allocation2], %s231
        // Predicated region
        $region41: #{tpu_custom_call.1} parent=39 // pred_check
          %p233 = pneg %p57
        $region42: #{tpu_custom_call.1} parent=39 // pred_check_branch
          %235 = sbr.rel (%p233) target = $region44
        $region43: #{tpu_custom_call.1} parent=39 // pred_region
          %236 = dma.done %s229, 128
        $region44: #{tpu_custom_call.1} parent=39 // pred_fallthru
          _
        %s237 = sand.u32 %s44, 1
        %s238 = scalar_lea.sflag [#allocation3], %s237
        %s239 = sand.u32 %s44, 1
        %s240 = smul.addr %s239, 8
        %s241 = scalar_lea.vmem [#allocation2], %s240
        %p242 = pneg %p57
        %p243 = pneg %p54
        %p244 = pneg %p78
        %p245 = pneg %p75
        %p246 = pneg %p99
        %p247 = pneg %p96
        %p248 = pneg %p120
        %p249 = pneg %p117
        %p250 = pneg %p141
        %p251 = pneg %p138
        %p252 = pneg %p169
        %p253 = pneg %p166
        %s254 = sand.u32 %s156, 1
        %s255 = scalar_lea.sflag [#allocation4], %s254
        %s256 = sand.u32 %s156, 1
        %s257 = smul.addr %s256, 8
        %s258 = scalar_lea.vmem [#allocation5], %s257
        %s259 = smul.u32 2, %s27
        %s260 = smul.u32 2, %s27
        %v261 = vld [vmem:[%s232] sm:$0xff]
        %v262 = vld [vmem:[%s1] sm:$0x3]
        %v263 = vld [vmem:[%s2] sm:$0x3]
        %v264 = vld [vmem:[%s3] sm:$0xf]
        %v265 = vld [vmem:[%s4] sm:$0xf]
        %267 = vset.pattern.permute.xlu0 0
        %268 = vperm.xlu0 %267, %v262
        %v269 = vpop.permute.xlu0 %268
        %v272 = vlaneseq
        %v273 = vshrl.u32 %v272, 7
        %v274 = vsub.s32 0, %v273
        %v275 = vrot.slane %v261, %v274
        %v276 = vlaneseq
        %v277 = vshrl.u32 %v276, 7
        %v278 = vsub.s32 4, %v277
        %v279 = vrot.slane %v261, %v278
        %v282 = vlaneseq
        %v283 = vshrl.u32 %v282, 7
        %v284 = vsub.s32 0, %v283
        %v285 = vrot.slane %v275, %v284
        %v286 = vlaneseq
        %v287 = vshrl.u32 %v286, 7
        %v288 = vsub.s32 0, %v287
        %v289 = vrot.slane %v279, %v288
        %v290 = vmul.f32 %v269, %v285
        %v291 = vmul.f32 %v269, %v289
        %292 = vset.pattern.permute.xlu0 1
        %293 = vperm.xlu0 %292, %v262
        %v294 = vpop.permute.xlu0 %293
        %v296 = vlaneseq
        %v297 = vshrl.u32 %v296, 7
        %v298 = vsub.s32 1, %v297
        %v299 = vrot.slane %v261, %v298
        %v300 = vlaneseq
        %v301 = vshrl.u32 %v300, 7
        %v302 = vsub.s32 5, %v301
        %v303 = vrot.slane %v261, %v302
        %v306 = vlaneseq
        %v307 = vshrl.u32 %v306, 7
        %v308 = vsub.s32 1, %v307
        %v309 = vrot.slane %v299, %v308
        %v310 = vlaneseq
        %v311 = vshrl.u32 %v310, 7
        %v312 = vsub.s32 1, %v311
        %v313 = vrot.slane %v303, %v312
        %v314 = vmul.f32 %v294, %v309
        %v315 = vmul.f32 %v294, %v313
        %v316 = vadd.f32 %v290, %v314
        %v317 = vadd.f32 %v291, %v315
        %318 = vset.pattern.permute.xlu0 2
        %319 = vperm.xlu0 %318, %v262
        %v320 = vpop.permute.xlu0 %319
        %v322 = vlaneseq
        %v323 = vshrl.u32 %v322, 7
        %v324 = vsub.s32 2, %v323
        %v325 = vrot.slane %v261, %v324
        %v326 = vlaneseq
        %v327 = vshrl.u32 %v326, 7
        %v328 = vsub.s32 6, %v327
        %v329 = vrot.slane %v261, %v328
        %v332 = vlaneseq
        %v333 = vshrl.u32 %v332, 7
        %v334 = vsub.s32 2, %v333
        %v335 = vrot.slane %v325, %v334
        %v336 = vlaneseq
        %v337 = vshrl.u32 %v336, 7
        %v338 = vsub.s32 2, %v337
        %v339 = vrot.slane %v329, %v338
        %v340 = vmul.f32 %v320, %v335
        %v341 = vmul.f32 %v320, %v339
        %v342 = vadd.f32 %v316, %v340
        %v343 = vadd.f32 %v317, %v341
        %344 = vset.pattern.permute.xlu0 3
        %345 = vperm.xlu0 %344, %v262
        %v346 = vpop.permute.xlu0 %345
        %v348 = vlaneseq
        %v349 = vshrl.u32 %v348, 7
        %v350 = vsub.s32 3, %v349
        %v351 = vrot.slane %v261, %v350
        %v352 = vlaneseq
        %v353 = vshrl.u32 %v352, 7
        %v354 = vsub.s32 7, %v353
        %v355 = vrot.slane %v261, %v354
        %v358 = vlaneseq
        %v359 = vshrl.u32 %v358, 7
        %v360 = vsub.s32 3, %v359
        %v361 = vrot.slane %v351, %v360
        %v362 = vlaneseq
        %v363 = vshrl.u32 %v362, 7
        %v364 = vsub.s32 3, %v363
        %v365 = vrot.slane %v355, %v364
        %v366 = vmul.f32 %v346, %v361
        %v367 = vmul.f32 %v346, %v365
        %v368 = vadd.f32 %v342, %v366
        %v369 = vadd.f32 %v343, %v367
        %371 = vset.pattern.permute.xlu0 0
        %372 = vperm.xlu0 %371, %v263
        %v373 = vpop.permute.xlu0 %372
        %v375 = vadd.f32 %v368, %v373
        %v376 = vadd.f32 %v369, %v373
        %v377 = vmax.f32 %v375, 0.0
        %v378 = vmax.f32 %v376, 0.0
        %380 = vset.pattern.permute.xlu0 0
        %381 = vperm.xlu0 %380, %v264
        %v382 = vpop.permute.xlu0 %381
        %v384 = vlaneseq
        %v385 = vshrl.u32 %v384, 7
        %v386 = vsub.s32 0, %v385
        %v387 = vrot.slane %v377, %v386
        %v388 = vlaneseq
        %v389 = vshrl.u32 %v388, 7
        %v390 = vsub.s32 0, %v389
        %v391 = vrot.slane %v378, %v390
        %v392 = vmul.f32 %v382, %v387
        %v393 = vmul.f32 %v382, %v391
        %394 = vset.pattern.permute.xlu0 1
        %395 = vperm.xlu0 %394, %v264
        %v396 = vpop.permute.xlu0 %395
        %v398 = vlaneseq
        %v399 = vshrl.u32 %v398, 7
        %v400 = vsub.s32 1, %v399
        %v401 = vrot.slane %v377, %v400
        %v402 = vlaneseq
        %v403 = vshrl.u32 %v402, 7
        %v404 = vsub.s32 1, %v403
        %v405 = vrot.slane %v378, %v404
        %v406 = vmul.f32 %v396, %v401
        %v407 = vmul.f32 %v396, %v405
        %v408 = vadd.f32 %v392, %v406
        %v409 = vadd.f32 %v393, %v407
        %411 = vset.pattern.permute.xlu0 0
        %412 = vperm.xlu0 %411, %v265
        %v413 = vpop.permute.xlu0 %412
        %v415 = vadd.f32 %v408, %v413
        %v416 = vadd.f32 %v409, %v413
        %v417 = vxor.u32 %v415, 2147483648
        %v418 = vxor.u32 %v416, 2147483648
        %v419 = vmul.f32 %v417, 1.442695
        %v420 = vpow.pop %v419
        %v421 = vmul.f32 %v418, 1.442695
        %v422 = vpow.pop %v421
        %v423 = vadd.f32 %v420, 1.0
        %v424 = vadd.f32 %v422, 1.0
        %v425 = vrcp.pop %v423
        %v426 = vmul.f32 1.0, %v425
        %v427 = vrcp.pop %v424
        %v428 = vmul.f32 1.0, %v427
        %v429 = vcombine.high %v261, %v261
        %v431 = vmul.f32 %v426, %v261
        %v432 = vmul.f32 %v428, %v429
        %v435 = vcombine.low %v431, %v432
        %437 = vst [vmem:[%s258] sm:$0xff] %v435
        %s438 = sand.u32 %s156, 1
        %s439 = scalar_lea.sflag [#allocation4], %s438
        %s440 = sand.u32 %s156, 1
        %s441 = smul.addr %s440, 8
        %s442 = scalar_lea.vmem [#allocation5], %s441
        // Predicated region
        $region45: #{tpu_custom_call.1} parent=39 // pred_check
          %p443 = pneg %p166
        $region46: #{tpu_custom_call.1} parent=39 // pred_check_branch
          %445 = sbr.rel (%p443) target = $region48
        $region47: #{tpu_custom_call.1} parent=39 // pred_region
          %s446 = smul.u32 2, %s27
          %s448 = ssub.s32 128, 128
          %449 = vsyncadd %s439, %s448
          %s450 = smul.addr %s26, 2
          %s451 = sadd.s32 %s446, %s450
          %s452 = smul.addr %s451, 64
          %s453 = scalar_lea.hbm %s5, %s452
          %s455 = sshll.u32 %s442, 4
          %s456 = int_to_ptr.vmem [resolvable:$true] %s455
          %458 = dma.vmem_to_hbm [thread:$0]  %s456, 128, %s453, %s439
        $region48: #{tpu_custom_call.1} parent=39 // pred_fallthru
          _
      $region40: #{tpu_custom_call.1} parent=5 // pred_fallthru
        _
      %p459 = scmp.le.s32.totalorder 2, %s17
      // Predicated region
      $region49: #{tpu_custom_call.1} parent=5 // pred_check
        %p460 = pneg %p459
      $region50: #{tpu_custom_call.1} parent=5 // pred_check_branch
        %462 = sbr.rel (%p460) target = $region52
      $region51: #{tpu_custom_call.1} parent=5 // pred_region
        %s463 = ssub.s32 %s17, 2
        // Predicated region
        $region53: #{tpu_custom_call.1} parent=51 // pred_check
          %p464 = pneg %p172
        $region54: #{tpu_custom_call.1} parent=51 // pred_check_branch
          %466 = sbr.rel (%p464) target = $region56
        $region55: #{tpu_custom_call.1} parent=51 // pred_region
          %s467 = sand.u32 %s157, 1
          %s468 = scalar_lea.sflag [#allocation4], %s467
          %s469 = sand.u32 %s157, 1
          %s470 = smul.addr %s469, 8
          %s471 = scalar_lea.vmem [#allocation5], %s470
          %472 = dma.done %s468, 128
        $region56: #{tpu_custom_call.1} parent=51 // pred_fallthru
          _
      $region52: #{tpu_custom_call.1} parent=5 // pred_fallthru
        _
    $region6: #{tpu_custom_call.1} parent=1 // loop_footer
      %s21 = sadd.s32 1, %s17
    $region7: #{tpu_custom_call.1} parent=1 // loop_footer_branch
      %16 = sbr.rel target = $region3
    $region8: #{tpu_custom_call.1} parent=1 // loop_exit
      _
    %473 = vsyncpa [#allocation3], 1
    %s474 = scalar_lea.sflag [#allocation3], 1
    %475 = vsyncpa %s474, 1
    %476 = vsyncpa [#allocation4], 1
    %s477 = scalar_lea.sflag [#allocation4], 1
    %478 = vsyncpa %s477, 1

</llo_original>
